<compile_context>
chip_gen: v6e
topology: v6e:2x2x1
jax: 0.10.0
libtpu: 0.0.40
codegen_flags: <defaults>
</compile_context>

<pallas_src>
import jax
import jax.numpy as jnp
from jax.experimental import pallas as pl
from jax.experimental.pallas import tpu as pltpu

H1 = 600
H2 = 100
LANE = 128


def _round_up(n, m):
    return ((n + m - 1) // m) * m


def _pick_bm(batch):
    """Large MXU-friendly batch tile; keep >=2 grid steps when batch allows."""
    if batch <= 256:
        return _round_up(batch, 8)
    if batch <= 1024:
        return 256
    return 512


def _mlp3_kernel(x_ref, w1_ref, b1_ref, w2_ref, b2_ref, w3_ref, b3_ref, o_ref):
    # Layer 1: Linear (+bias folded into f32 accumulator) -> ReLU
    h1 = jnp.dot(x_ref[...], w1_ref[...], preferred_element_type=jnp.float32)
    h1 = jnp.maximum(h1 + b1_ref[...], 0.0).astype(w2_ref.dtype)
    # Layer 2: Linear -> ReLU
    h2 = jnp.dot(h1, w2_ref[...], preferred_element_type=jnp.float32)
    h2 = jnp.maximum(h2 + b2_ref[...], 0.0).astype(w3_ref.dtype)
    # Layer 3: output head
    out = jnp.dot(h2, w3_ref[...], preferred_element_type=jnp.float32)
    o_ref[...] = (out + b3_ref[...]).astype(o_ref.dtype)


def light_mlp3_forward(x, params, *, bm=None, compute_dtype=jnp.float32):
    """x: (B, num_feature) float32. params: (in,out) weights + (1,out) biases."""
    w1, b1 = params["w1"], params["b1"]
    w2, b2 = params["w2"], params["b2"]
    w3, b3 = params["w3"], params["b3"]

    B, F = x.shape
    out_size = w3.shape[1]

    # 128-lane padded dims (zero padding keeps the math exact).
    F_p = _round_up(F, LANE)
    H1_p = _round_up(H1, LANE)       # 600 -> 640
    H2_p = _round_up(H2, LANE)       # 100 -> 128
    O_p = _round_up(out_size, LANE)  # e.g. 10 -> 128

    if bm is None:
        bm = _pick_bm(B)
    B_p = _round_up(B, bm)

    def pad2(a, rows, cols, dtype):
        return jnp.pad(a, ((0, rows - a.shape[0]), (0, cols - a.shape[1]))).astype(dtype)

    x_p = pad2(x, B_p, F_p, compute_dtype)
    w1_p = pad2(w1, F_p, H1_p, compute_dtype)
    w2_p = pad2(w2, H1_p, H2_p, compute_dtype)
    w3_p = pad2(w3, H2_p, O_p, compute_dtype)
    # Biases stay f32: they are folded into the f32 accumulator.
    b1_p = pad2(b1, 1, H1_p, jnp.float32)
    b2_p = pad2(b2, 1, H2_p, jnp.float32)
    b3_p = pad2(b3, 1, O_p, jnp.float32)

    grid = (B_p // bm,)
    full = lambda i: (0, 0)  # weights/biases: single full block, VMEM-resident

    out_p = pl.pallas_call(
        _mlp3_kernel,
        out_shape=jax.ShapeDtypeStruct((B_p, O_p), x.dtype),
        grid_spec=pltpu.PrefetchScalarGridSpec(
            num_scalar_prefetch=0,
            grid=grid,
            in_specs=[
                pl.BlockSpec((bm, F_p), lambda i: (i, 0)),  # x tile over batch
                pl.BlockSpec((F_p, H1_p), full),            # W1
                pl.BlockSpec((1, H1_p), full),              # b1
                pl.BlockSpec((H1_p, H2_p), full),           # W2
                pl.BlockSpec((1, H2_p), full),              # b2
                pl.BlockSpec((H2_p, O_p), full),            # W3
                pl.BlockSpec((1, O_p), full),               # b3
            ],
            out_specs=pl.BlockSpec((bm, O_p), lambda i: (i, 0)),
        ),
        compiler_params=pltpu.CompilerParams(
            dimension_semantics=("parallel",),
        ),
    )(x_p, w1_p, b1_p, w2_p, b2_p, w3_p, b3_p)

    # Slice away batch / lane padding.
    return out_p[:B, :out_size]


def init_params(key, num_feature, output_size):
    """Deterministic init mirroring nn.Linear's U(-1/sqrt(fan_in), 1/sqrt(fan_in))."""
    ks = jax.random.split(key, 6)

    def lin(kw, kb, fan_in, fan_out):
        bound = 1.0 / jnp.sqrt(jnp.float32(fan_in))
        w = jax.random.uniform(kw, (fan_in, fan_out), jnp.float32, -bound, bound)
        b = jax.random.uniform(kb, (1, fan_out), jnp.float32, -bound, bound)
        return w, b

    w1, b1 = lin(ks[0], ks[1], num_feature, H1)
    w2, b2 = lin(ks[2], ks[3], H1, H2)
    w3, b3 = lin(ks[4], ks[5], H2, output_size)
    return {"w1": w1, "b1": b1, "w2": w2, "b2": b2, "w3": w3, "b3": b3}


def reference_forward(x, p):
    h1 = jnp.maximum(x @ p["w1"] + p["b1"], 0.0)
    h2 = jnp.maximum(h1 @ p["w2"] + p["b2"], 0.0)
    return h2 @ p["w3"] + p["b3"]


if __name__ == "__main__":
    key = jax.random.PRNGKey(0)
    k_x, k_p, k_x2 = jax.random.split(key, 3)

    num_feature = 32
    output_size = 10
    params = init_params(k_p, num_feature, output_size)

    # Small-batch f32 check (exact path).
    batch = 8
    x = jax.random.normal(k_x, (batch, num_feature), jnp.float32)
    out = jax.block_until_ready(light_mlp3_forward(x, params))
    ref = reference_forward(x, params)
    assert out.shape == (batch, output_size)
    assert jnp.allclose(out, ref, atol=1e-4, rtol=1e-4), "f32 mismatch vs reference"

    # Non-divisible batch exercises padding + slicing; bf16 compute path
    # exercises the v6e/v7x-oriented MXU configuration (looser tolerance).
    batch2 = 300
    x2 = jax.random.normal(k_x2, (batch2, num_feature), jnp.float32)
    out2_f32 = jax.block_until_ready(light_mlp3_forward(x2, params))
    ref2 = reference_forward(x2, params)
    assert out2_f32.shape == (batch2, output_size)
    assert jnp.allclose(out2_f32, ref2, atol=1e-4, rtol=1e-4), "padded-batch f32 mismatch"

    out2_bf16 = jax.block_until_ready(
        light_mlp3_forward(x2, params, compute_dtype=jnp.bfloat16)
    )
    assert jnp.allclose(out2_bf16, ref2, atol=5e-2, rtol=5e-2), "bf16 mismatch vs reference"

    print("KERNEL_OK")
</pallas_src>

<mosaic_0001>
module attributes {stable_mosaic.version = 11 : i64} {
  func.func @_mlp3_kernel(%arg0: i32, %arg1: memref<8x128xf32, #tpu.memory_space<vmem>>, %arg2: memref<128x640xf32, #tpu.memory_space<vmem>>, %arg3: memref<1x640xf32, #tpu.memory_space<vmem>>, %arg4: memref<640x128xf32, #tpu.memory_space<vmem>>, %arg5: memref<1x128xf32, #tpu.memory_space<vmem>>, %arg6: memref<128x128xf32, #tpu.memory_space<vmem>>, %arg7: memref<1x128xf32, #tpu.memory_space<vmem>>, %arg8: memref<8x128xf32, #tpu.memory_space<vmem>>) attributes {dimension_semantics = [#tpu.dimension_semantics<parallel>], iteration_bounds = array<i64: 1>, scalar_prefetch = 0 : i64, scratch_operands = 0 : i64, tpu.core_type = #tpu.core_type<tc>, window_params = [{transform_indices = @transform_0, window_bounds = array<i64: 8, 128>}, {pipeline_mode = #tpu.pipeline_mode<synchronous>, transform_indices = @transform_1, window_bounds = array<i64: 128, 640>}, {pipeline_mode = #tpu.pipeline_mode<synchronous>, transform_indices = @transform_2, window_bounds = array<i64: 1, 640>}, {pipeline_mode = #tpu.pipeline_mode<synchronous>, transform_indices = @transform_3, window_bounds = array<i64: 640, 128>}, {pipeline_mode = #tpu.pipeline_mode<synchronous>, transform_indices = @transform_4, window_bounds = array<i64: 1, 128>}, {pipeline_mode = #tpu.pipeline_mode<synchronous>, transform_indices = @transform_5, window_bounds = array<i64: 128, 128>}, {pipeline_mode = #tpu.pipeline_mode<synchronous>, transform_indices = @transform_6, window_bounds = array<i64: 1, 128>}, {transform_indices = @transform_7, window_bounds = array<i64: 8, 128>}]} {
    %c0 = arith.constant 0 : index
    %c0_0 = arith.constant 0 : index
    %0 = vector.load %arg1[%c0, %c0_0] : memref<8x128xf32, #tpu.memory_space<vmem>>, vector<8x128xf32>
    %c0_1 = arith.constant 0 : index
    %c0_2 = arith.constant 0 : index
    %1 = vector.load %arg2[%c0_1, %c0_2] : memref<128x640xf32, #tpu.memory_space<vmem>>, vector<128x640xf32>
    %cst = arith.constant dense<0.000000e+00> : vector<8x640xf32>
    %2 = tpu.matmul %0, %1, %cst {dimension_numbers = #tpu.dot_dimension_numbers<[1], [0], [0], [1], [0, 0, 1, 1], [], []>} : vector<8x128xf32>, vector<128x640xf32>, vector<8x640xf32> -> vector<8x640xf32>
    %c0_3 = arith.constant 0 : index
    %c0_4 = arith.constant 0 : index
    %3 = vector.load %arg3[%c0_3, %c0_4] : memref<1x640xf32, #tpu.memory_space<vmem>>, vector<1x640xf32>
    %4 = vector.broadcast %3 : vector<1x640xf32> to vector<8x640xf32>
    %5 = arith.addf %2, %4 : vector<8x640xf32>
    %cst_5 = arith.constant 0.000000e+00 : f32
    %6 = vector.broadcast %cst_5 : f32 to vector<8x640xf32>
    %7 = arith.maximumf %5, %6 : vector<8x640xf32>
    %c0_6 = arith.constant 0 : index
    %c0_7 = arith.constant 0 : index
    %8 = vector.load %arg4[%c0_6, %c0_7] : memref<640x128xf32, #tpu.memory_space<vmem>>, vector<640x128xf32>
    %cst_8 = arith.constant dense<0.000000e+00> : vector<8x128xf32>
    %9 = tpu.matmul %7, %8, %cst_8 {dimension_numbers = #tpu.dot_dimension_numbers<[1], [0], [0], [1], [0, 0, 1, 1], [], []>} : vector<8x640xf32>, vector<640x128xf32>, vector<8x128xf32> -> vector<8x128xf32>
    %c0_9 = arith.constant 0 : index
    %c0_10 = arith.constant 0 : index
    %10 = vector.load %arg5[%c0_9, %c0_10] : memref<1x128xf32, #tpu.memory_space<vmem>>, vector<1x128xf32>
    %11 = vector.broadcast %10 : vector<1x128xf32> to vector<8x128xf32>
    %12 = arith.addf %9, %11 : vector<8x128xf32>
    %cst_11 = arith.constant 0.000000e+00 : f32
    %13 = vector.broadcast %cst_11 : f32 to vector<8x128xf32>
    %14 = arith.maximumf %12, %13 : vector<8x128xf32>
    %c0_12 = arith.constant 0 : index
    %c0_13 = arith.constant 0 : index
    %15 = vector.load %arg6[%c0_12, %c0_13] : memref<128x128xf32, #tpu.memory_space<vmem>>, vector<128x128xf32>
    %cst_14 = arith.constant dense<0.000000e+00> : vector<8x128xf32>
    %16 = tpu.matmul %14, %15, %cst_14 {dimension_numbers = #tpu.dot_dimension_numbers<[1], [0], [0], [1], [0, 0, 1, 1], [], []>} : vector<8x128xf32>, vector<128x128xf32>, vector<8x128xf32> -> vector<8x128xf32>
    %c0_15 = arith.constant 0 : index
    %c0_16 = arith.constant 0 : index
    %17 = vector.load %arg7[%c0_15, %c0_16] : memref<1x128xf32, #tpu.memory_space<vmem>>, vector<1x128xf32>
    %18 = vector.broadcast %17 : vector<1x128xf32> to vector<8x128xf32>
    %19 = arith.addf %16, %18 : vector<8x128xf32>
    %c0_17 = arith.constant 0 : index
    %c0_18 = arith.constant 0 : index
    %20 = vector.load %arg8[%c0_17, %c0_18] : memref<8x128xf32, #tpu.memory_space<vmem>>, vector<8x128xf32>
    tpu.vector_store %arg8[%c0_17, %c0_18], %19 {strides = array<i32>} : memref<8x128xf32, #tpu.memory_space<vmem>>, vector<8x128xf32>,
    return
  }
  func.func @transform_0(%arg0: i32) -> (i32, i32) {
    %c0_i32 = arith.constant 0 : i32
    %c0_i32_0 = arith.constant 0 : i32
    return %arg0, %c0_i32 : i32, i32
  }
  func.func @transform_1(%arg0: i32) -> (i32, i32) {
    %c0_i32 = arith.constant 0 : i32
    %c0_i32_0 = arith.constant 0 : i32
    %c0_i32_1 = arith.constant 0 : i32
    return %c0_i32, %c0_i32_0 : i32, i32
  }
  func.func @transform_2(%arg0: i32) -> (i32, i32) {
    %c0_i32 = arith.constant 0 : i32
    %c0_i32_0 = arith.constant 0 : i32
    %c0_i32_1 = arith.constant 0 : i32
    return %c0_i32, %c0_i32_0 : i32, i32
  }
  func.func @transform_3(%arg0: i32) -> (i32, i32) {
    %c0_i32 = arith.constant 0 : i32
    %c0_i32_0 = arith.constant 0 : i32
    %c0_i32_1 = arith.constant 0 : i32
    return %c0_i32, %c0_i32_0 : i32, i32
  }
  func.func @transform_4(%arg0: i32) -> (i32, i32) {
    %c0_i32 = arith.constant 0 : i32
    %c0_i32_0 = arith.constant 0 : i32
    %c0_i32_1 = arith.constant 0 : i32
    return %c0_i32, %c0_i32_0 : i32, i32
  }
  func.func @transform_5(%arg0: i32) -> (i32, i32) {
    %c0_i32 = arith.constant 0 : i32
    %c0_i32_0 = arith.constant 0 : i32
    %c0_i32_1 = arith.constant 0 : i32
    return %c0_i32, %c0_i32_0 : i32, i32
  }
  func.func @transform_6(%arg0: i32) -> (i32, i32) {
    %c0_i32 = arith.constant 0 : i32
    %c0_i32_0 = arith.constant 0 : i32
    %c0_i32_1 = arith.constant 0 : i32
    return %c0_i32, %c0_i32_0 : i32, i32
  }
  func.func @transform_7(%arg0: i32) -> (i32, i32) {
    %c0_i32 = arith.constant 0 : i32
    %c0_i32_0 = arith.constant 0 : i32
    return %arg0, %c0_i32 : i32, i32
  }
}

</mosaic_0001>

<llo_original>
// kernel: tpu_custom_call.1
$region0: #{tpu_custom_call.1}
  #allocation0 [shape = 'u32[]', space=smem, size = 0x4, offset = 0x4, fixed_abs, tag = 'smem constant byte address 0x4 - core index']
  #allocation1 [shape = 'u32[144,128]{1,0:T(1,128)}', space=vmem, size = 0x12000, scoped, tag = 'internal scratch']
  %s0 = inlined_call_operand.hbm [shape: f32[8,128], index: 0, kind: input, shape index: {}]
  %s1 = inlined_call_operand.hbm [shape: f32[128,640], index: 1, kind: input, shape index: {}]
  %s2 = inlined_call_operand.hbm [shape: f32[1,640], index: 2, kind: input, shape index: {}]
  %s3 = inlined_call_operand.hbm [shape: f32[640,128], index: 3, kind: input, shape index: {}]
  %s4 = inlined_call_operand.vmem [shape: f32[1,128], index: 4, kind: input, shape index: {}]
  %s5 = inlined_call_operand.hbm [shape: f32[128,128], index: 5, kind: input, shape index: {}]
  %s6 = inlined_call_operand.vmem [shape: f32[1,128], index: 6, kind: input, shape index: {}]
  %s7 = inlined_call_operand.hbm [shape: f32[8,128], index: 7, kind: output, shape index: {}]
  %s8 = sld [smem:[#allocation0]]
  $region58: #{tpu_custom_call.1} parent=0
    _
  %s10 = ssub.s32 1, %s8
  %s11 = scalar_select 0, %s10, %s8
  $region1: #{tpu_custom_call.1} parent=0
    #allocation2 [shape = 'u8[4096]{0}', space=vmem, size = 0x1000, scoped, tag = 'input window, operand 0, single buffered']
    #allocation3 [shape = 's32[1]{0}', space=sflag, size = 0x4, scoped, tag = 'scoped memory for tpu_custom_call.1']
    #allocation4 [shape = 's32[1]{0}', space=sflag, size = 0x4, scoped, tag = 'scoped memory for tpu_custom_call.1']
    #allocation5 [shape = 'u8[327680]{0}', space=vmem, size = 0x50000, scoped, tag = 'input window, operand 1, single buffered']
    #allocation6 [shape = 's32[1]{0}', space=sflag, size = 0x4, scoped, tag = 'scoped memory for tpu_custom_call.1']
    #allocation7 [shape = 'u8[2560]{0}', space=vmem, size = 0xc00, scoped, tag = 'input window, operand 2, single buffered']
    #allocation8 [shape = 'u8[327680]{0}', space=vmem, size = 0x50000, scoped, tag = 'input window, operand 3, single buffered']
    #allocation9 [shape = 's32[1]{0}', space=sflag, size = 0x4, scoped, tag = 'scoped memory for tpu_custom_call.1']
    #allocation10 [shape = 'u8[65536]{0}', space=vmem, size = 0x10000, scoped, tag = 'input window, operand 5, single buffered']
    #allocation11 [shape = 'u8[4096]{0}', space=vmem, size = 0x1000, scoped, tag = 'output window, operand 0, single buffered']
    %12 = vsyncpa [#allocation3], 0
    %13 = vsyncpa [#allocation6], 0
    %14 = vsyncpa [#allocation9], 0
    %15 = vsyncpa [#allocation4], 0
    // Predicated region
    $region2: #{tpu_custom_call.1} parent=1 // pred_check
      _
    $region3: #{tpu_custom_call.1} parent=1 // pred_check_branch
      %17 = sbr.rel (0) target = $region5
    $region4: #{tpu_custom_call.1} parent=1 // pred_region
      %s19 = ssub.s32 128, 128
      %20 = vsyncadd [#allocation3], %s19
      %s22 = sshll.u32 [#allocation2], 4
      %s23 = int_to_ptr.vmem [resolvable:$true] %s22
      %25 = dma.hbm_to_vmem [thread:$0]  %s0, 128, %s23, [#allocation3]
    $region5: #{tpu_custom_call.1} parent=1 // pred_fallthru
      _
    // Predicated region
    $region6: #{tpu_custom_call.1} parent=1 // pred_check
      _
    $region7: #{tpu_custom_call.1} parent=1 // pred_check_branch
      %27 = sbr.rel (0) target = $region9
    $region8: #{tpu_custom_call.1} parent=1 // pred_region
      %s29 = ssub.s32 10240, 10240
      %30 = vsyncadd [#allocation6], %s29
      %s31 = sshll.u32 [#allocation5], 4
      %s32 = int_to_ptr.vmem [resolvable:$true] %s31
      %37 = dma.hbm_to_vmem [thread:$0]  %s1, 10240, %s32, [#allocation6], 640, 640, 40
    $region9: #{tpu_custom_call.1} parent=1 // pred_fallthru
      _
    // Predicated region
    $region10: #{tpu_custom_call.1} parent=1 // pred_check
      _
    $region11: #{tpu_custom_call.1} parent=1 // pred_check_branch
      %39 = sbr.rel (0) target = $region13
    $region12: #{tpu_custom_call.1} parent=1 // pred_region
      %s41 = ssub.s32 80, 80
      %42 = vsyncadd [#allocation6], %s41
      %s44 = sshll.u32 [#allocation7], 4
      %s45 = int_to_ptr.vmem [resolvable:$true] %s44
      %47 = dma.hbm_to_vmem [thread:$0]  %s2, 80, %s45, [#allocation6]
    $region13: #{tpu_custom_call.1} parent=1 // pred_fallthru
      _
    // Predicated region
    $region14: #{tpu_custom_call.1} parent=1 // pred_check
      _
    $region15: #{tpu_custom_call.1} parent=1 // pred_check_branch
      %49 = sbr.rel (0) target = $region17
    $region16: #{tpu_custom_call.1} parent=1 // pred_region
      %s51 = ssub.s32 10240, 10240
      %52 = vsyncadd [#allocation9], %s51
      %s53 = sshll.u32 [#allocation8], 4
      %s54 = int_to_ptr.vmem [resolvable:$true] %s53
      %59 = dma.hbm_to_vmem [thread:$0]  %s3, 10240, %s54, [#allocation9], 128, 128, 8
    $region17: #{tpu_custom_call.1} parent=1 // pred_fallthru
      _
    // Predicated region
    $region18: #{tpu_custom_call.1} parent=1 // pred_check
      _
    $region19: #{tpu_custom_call.1} parent=1 // pred_check_branch
      %61 = sbr.rel (0) target = $region21
    $region20: #{tpu_custom_call.1} parent=1 // pred_region
      _
    $region21: #{tpu_custom_call.1} parent=1 // pred_fallthru
      _
    // Predicated region
    $region22: #{tpu_custom_call.1} parent=1 // pred_check
      _
    $region23: #{tpu_custom_call.1} parent=1 // pred_check_branch
      %63 = sbr.rel (0) target = $region25
    $region24: #{tpu_custom_call.1} parent=1 // pred_region
      %s65 = ssub.s32 2048, 2048
      %66 = vsyncadd [#allocation9], %s65
      %s67 = sshll.u32 [#allocation10], 4
      %s68 = int_to_ptr.vmem [resolvable:$true] %s67
      %73 = dma.hbm_to_vmem [thread:$0]  %s5, 2048, %s68, [#allocation9], 128, 128, 8
    $region25: #{tpu_custom_call.1} parent=1 // pred_fallthru
      _
    // Predicated region
    $region26: #{tpu_custom_call.1} parent=1 // pred_check
      _
    $region27: #{tpu_custom_call.1} parent=1 // pred_check_branch
      %75 = sbr.rel (0) target = $region29
    $region28: #{tpu_custom_call.1} parent=1 // pred_region
      _
    $region29: #{tpu_custom_call.1} parent=1 // pred_fallthru
      _
    // Predicated region
    $region30: #{tpu_custom_call.1} parent=1 // pred_check
      _
    $region31: #{tpu_custom_call.1} parent=1 // pred_check_branch
      %77 = sbr.rel (0) target = $region33
    $region32: #{tpu_custom_call.1} parent=1 // pred_region
      %78 = dma.done [#allocation3], 128
    $region33: #{tpu_custom_call.1} parent=1 // pred_fallthru
      _
    // Predicated region
    $region34: #{tpu_custom_call.1} parent=1 // pred_check
      _
    $region35: #{tpu_custom_call.1} parent=1 // pred_check_branch
      %80 = sbr.rel (0) target = $region37
    $region36: #{tpu_custom_call.1} parent=1 // pred_region
      %81 = dma.done [#allocation6], 10240
    $region37: #{tpu_custom_call.1} parent=1 // pred_fallthru
      _
    // Predicated region
    $region38: #{tpu_custom_call.1} parent=1 // pred_check
      _
    $region39: #{tpu_custom_call.1} parent=1 // pred_check_branch
      %83 = sbr.rel (0) target = $region41
    $region40: #{tpu_custom_call.1} parent=1 // pred_region
      %84 = dma.done [#allocation6], 80
    $region41: #{tpu_custom_call.1} parent=1 // pred_fallthru
      _
    // Predicated region
    $region42: #{tpu_custom_call.1} parent=1 // pred_check
      _
    $region43: #{tpu_custom_call.1} parent=1 // pred_check_branch
      %86 = sbr.rel (0) target = $region45
    $region44: #{tpu_custom_call.1} parent=1 // pred_region
      %87 = dma.done [#allocation9], 10240
    $region45: #{tpu_custom_call.1} parent=1 // pred_fallthru
      _
    // Predicated region
    $region46: #{tpu_custom_call.1} parent=1 // pred_check
      _
    $region47: #{tpu_custom_call.1} parent=1 // pred_check_branch
      %89 = sbr.rel (0) target = $region49
    $region48: #{tpu_custom_call.1} parent=1 // pred_region
      %90 = dma.done [#allocation9], 2048
    $region49: #{tpu_custom_call.1} parent=1 // pred_fallthru
      _
    %v91 = vld [vmem:[#allocation2] sm:$0xff]
    %v92 = vld [vmem:[#allocation5] sm:$0xff]
    %v93 = vld [vmem:[#allocation5 + $0x8] sm:$0xff]
    %v94 = vld [vmem:[#allocation5 + $0x10] sm:$0xff]
    %v95 = vld [vmem:[#allocation5 + $0x18] sm:$0xff]
    %v96 = vld [vmem:[#allocation5 + $0x20] sm:$0xff]
    %v97 = vld [vmem:[#allocation5 + $0x28] sm:$0xff]
    %v98 = vld [vmem:[#allocation5 + $0x30] sm:$0xff]
    %v99 = vld [vmem:[#allocation5 + $0x38] sm:$0xff]
    %v100 = vld [vmem:[#allocation5 + $0x40] sm:$0xff]
    %v101 = vld [vmem:[#allocation5 + $0x48] sm:$0xff]
    %v102 = vld [vmem:[#allocation5 + $0x50] sm:$0xff]
    %v103 = vld [vmem:[#allocation5 + $0x58] sm:$0xff]
    %v104 = vld [vmem:[#allocation5 + $0x60] sm:$0xff]
    %v105 = vld [vmem:[#allocation5 + $0x68] sm:$0xff]
    %v106 = vld [vmem:[#allocation5 + $0x70] sm:$0xff]
    %v107 = vld [vmem:[#allocation5 + $0x78] sm:$0xff]
    %v108 = vld [vmem:[#allocation5 + $0x80] sm:$0xff]
    %v109 = vld [vmem:[#allocation5 + $0x88] sm:$0xff]
    %v110 = vld [vmem:[#allocation5 + $0x90] sm:$0xff]
    %v111 = vld [vmem:[#allocation5 + $0x98] sm:$0xff]
    %v112 = vld [vmem:[#allocation5 + $0xa0] sm:$0xff]
    %v113 = vld [vmem:[#allocation5 + $0xa8] sm:$0xff]
    %v114 = vld [vmem:[#allocation5 + $0xb0] sm:$0xff]
    %v115 = vld [vmem:[#allocation5 + $0xb8] sm:$0xff]
    %v116 = vld [vmem:[#allocation5 + $0xc0] sm:$0xff]
    %v117 = vld [vmem:[#allocation5 + $0xc8] sm:$0xff]
    %v118 = vld [vmem:[#allocation5 + $0xd0] sm:$0xff]
    %v119 = vld [vmem:[#allocation5 + $0xd8] sm:$0xff]
    %v120 = vld [vmem:[#allocation5 + $0xe0] sm:$0xff]
    %v121 = vld [vmem:[#allocation5 + $0xe8] sm:$0xff]
    %v122 = vld [vmem:[#allocation5 + $0xf0] sm:$0xff]
    %v123 = vld [vmem:[#allocation5 + $0xf8] sm:$0xff]
    %v124 = vld [vmem:[#allocation5 + $0x100] sm:$0xff]
    %v125 = vld [vmem:[#allocation5 + $0x108] sm:$0xff]
    %v126 = vld [vmem:[#allocation5 + $0x110] sm:$0xff]
    %v127 = vld [vmem:[#allocation5 + $0x118] sm:$0xff]
    %v128 = vld [vmem:[#allocation5 + $0x120] sm:$0xff]
    %v129 = vld [vmem:[#allocation5 + $0x128] sm:$0xff]
    %v130 = vld [vmem:[#allocation5 + $0x130] sm:$0xff]
    %v131 = vld [vmem:[#allocation5 + $0x138] sm:$0xff]
    %v132 = vld [vmem:[#allocation5 + $0x140] sm:$0xff]
    %v133 = vld [vmem:[#allocation5 + $0x148] sm:$0xff]
    %v134 = vld [vmem:[#allocation5 + $0x150] sm:$0xff]
    %v135 = vld [vmem:[#allocation5 + $0x158] sm:$0xff]
    %v136 = vld [vmem:[#allocation5 + $0x160] sm:$0xff]
    %v137 = vld [vmem:[#allocation5 + $0x168] sm:$0xff]
    %v138 = vld [vmem:[#allocation5 + $0x170] sm:$0xff]
    %v139 = vld [vmem:[#allocation5 + $0x178] sm:$0xff]
    %v140 = vld [vmem:[#allocation5 + $0x180] sm:$0xff]
    %v141 = vld [vmem:[#allocation5 + $0x188] sm:$0xff]
    %v142 = vld [vmem:[#allocation5 + $0x190] sm:$0xff]
    %v143 = vld [vmem:[#allocation5 + $0x198] sm:$0xff]
    %v144 = vld [vmem:[#allocation5 + $0x1a0] sm:$0xff]
    %v145 = vld [vmem:[#allocation5 + $0x1a8] sm:$0xff]
    %v146 = vld [vmem:[#allocation5 + $0x1b0] sm:$0xff]
    %v147 = vld [vmem:[#allocation5 + $0x1b8] sm:$0xff]
    %v148 = vld [vmem:[#allocation5 + $0x1c0] sm:$0xff]
    %v149 = vld [vmem:[#allocation5 + $0x1c8] sm:$0xff]
    %v150 = vld [vmem:[#allocation5 + $0x1d0] sm:$0xff]
    %v151 = vld [vmem:[#allocation5 + $0x1d8] sm:$0xff]
    %v152 = vld [vmem:[#allocation5 + $0x1e0] sm:$0xff]
    %v153 = vld [vmem:[#allocation5 + $0x1e8] sm:$0xff]
    %v154 = vld [vmem:[#allocation5 + $0x1f0] sm:$0xff]
    %v155 = vld [vmem:[#allocation5 + $0x1f8] sm:$0xff]
    %v156 = vld [vmem:[#allocation5 + $0x200] sm:$0xff]
    %v157 = vld [vmem:[#allocation5 + $0x208] sm:$0xff]
    %v158 = vld [vmem:[#allocation5 + $0x210] sm:$0xff]
    %v159 = vld [vmem:[#allocation5 + $0x218] sm:$0xff]
    %v160 = vld [vmem:[#allocation5 + $0x220] sm:$0xff]
    %v161 = vld [vmem:[#allocation5 + $0x228] sm:$0xff]
    %v162 = vld [vmem:[#allocation5 + $0x230] sm:$0xff]
    %v163 = vld [vmem:[#allocation5 + $0x238] sm:$0xff]
    %v164 = vld [vmem:[#allocation5 + $0x240] sm:$0xff]
    %v165 = vld [vmem:[#allocation5 + $0x248] sm:$0xff]
    %v166 = vld [vmem:[#allocation5 + $0x250] sm:$0xff]
    %v167 = vld [vmem:[#allocation5 + $0x258] sm:$0xff]
    %v168 = vld [vmem:[#allocation5 + $0x260] sm:$0xff]
    %v169 = vld [vmem:[#allocation5 + $0x268] sm:$0xff]
    %v170 = vld [vmem:[#allocation5 + $0x270] sm:$0xff]
    %v171 = vld [vmem:[#allocation5 + $0x278] sm:$0xff]
    %v172 = vld [vmem:[#allocation7] sm:$0x1f]
    %v174 = vlaneseq
    %v175 = vshrl.u32 %v174, 7
    %v176 = vsub.s32 0, %v175
    %v177 = vrot.slane %v172, %v176
    %v178 = vlaneseq
    %v179 = vshrl.u32 %v178, 7
    %v180 = vsub.s32 1, %v179
    %v181 = vrot.slane %v172, %v180
    %v182 = vlaneseq
    %v183 = vshrl.u32 %v182, 7
    %v184 = vsub.s32 2, %v183
    %v185 = vrot.slane %v172, %v184
    %v186 = vlaneseq
    %v187 = vshrl.u32 %v186, 7
    %v188 = vsub.s32 3, %v187
    %v189 = vrot.slane %v172, %v188
    %v190 = vlaneseq
    %v191 = vshrl.u32 %v190, 7
    %v192 = vsub.s32 4, %v191
    %v193 = vrot.slane %v172, %v192
    %199 = vmatprep.subr.mxu0 %v168
    %200 = vmatpush1.msra.mxu0 %v167
    %201 = vmatprep.subr.mxu0 %v163
    %202 = vmatpush1.msra.mxu0 %v162
    %203 = vmatprep.subr.mxu0 %v158
    %204 = vmatpush1.msra.mxu0 %v157
    %205 = vmatprep.subr.mxu0 %v153
    %206 = vmatpush1.msra.mxu0 %v152
    %207 = vmatprep.subr.mxu0 %v148
    %208 = vmatpush1.msra.mxu0 %v147
    %209 = vmatprep.subr.mxu0 %v143
    %210 = vmatpush1.msra.mxu0 %v142
    %211 = vmatprep.subr.mxu0 %v138
    %212 = vmatpush1.msra.mxu0 %v137
    %213 = vmatprep.subr.mxu0 %v133
    %214 = vmatpush1.msra.mxu0 %v132
    %215 = vmatprep.subr.mxu0 %v128
    %216 = vmatpush1.msra.mxu0 %v127
    %217 = vmatprep.subr.mxu0 %v123
    %218 = vmatpush1.msra.mxu0 %v122
    %219 = vmatprep.subr.mxu0 %v118
    %220 = vmatpush1.msra.mxu0 %v117
    %221 = vmatprep.subr.mxu0 %v113
    %222 = vmatpush1.msra.mxu0 %v112
    %223 = vmatprep.subr.mxu0 %v108
    %224 = vmatpush1.msra.mxu0 %v107
    %225 = vmatprep.subr.mxu0 %v103
    %226 = vmatpush1.msra.mxu0 %v102
    %227 = vmatprep.subr.mxu0 %v98
    %228 = vmatpush1.msra.mxu0 %v97
    %229 = vmatprep.subr.mxu0 %v93
    %230 = vmatpush1.msra.mxu0 %v92
    %231 = vmatprep.subr.mxu0 0.0
    %232 = vmatpush2.msra.mxu0 0.0
    %233 = vmatprep.subr.mxu0 0.0
    %234 = vmatpush2.msra.mxu0 0.0
    %235 = vmatprep.subr.mxu0 0.0
    %236 = vmatpush2.msra.mxu0 0.0
    %237 = vmatprep.subr.mxu0 0.0
    %238 = vmatpush2.msra.mxu0 0.0
    %239 = vmatprep.subr.mxu0 0.0
    %240 = vmatpush2.msra.mxu0 0.0
    %241 = vmatprep.subr.mxu0 0.0
    %242 = vmatpush2.msra.mxu0 0.0
    %243 = vmatprep.subr.mxu0 0.0
    %244 = vmatpush2.msra.mxu0 0.0
    %245 = vmatprep.subr.mxu0 0.0
    %246 = vmatpush2.msra.mxu0 0.0
    %247 = vmatprep.subr.mxu0 0.0
    %248 = vmatpush2.msra.mxu0 0.0
    %249 = vmatprep.subr.mxu0 0.0
    %250 = vmatpush2.msra.mxu0 0.0
    %251 = vmatprep.subr.mxu0 0.0
    %252 = vmatpush2.msra.mxu0 0.0
    %253 = vmatprep.subr.mxu0 0.0
    %254 = vmatpush2.msra.mxu0 0.0
    %255 = vmatprep.subr.mxu0 0.0
    %256 = vmatpush2.msra.mxu0 0.0
    %257 = vmatprep.subr.mxu0 0.0
    %258 = vmatpush2.msra.mxu0 0.0
    %259 = vmatprep.subr.mxu0 0.0
    %260 = vmatpush2.msra.mxu0 0.0
    %261 = vmatprep.subr.mxu0 0.0
    %262 = vmatpush2.msra.mxu0 0.0
    %263 = vmatprep.mubr.f32.mxu0 0.0
    %264 = vmatmul.mubr.f32.gmra.mxu0 %v91
    %v265 = vpop.f32.mrf.mxu0
    %v266 = vadd.f32 %v177, %v265
    %v267 = vpop.f32.mrf.mxu0
    %v268 = vadd.f32 %v181, %v267
    %269 = vdwg.mxu0
    %270 = vmatprep.subr.mxu0 %v170
    %271 = vmatpush1.msra.mxu0 %v169
    %272 = vmatprep.subr.mxu0 %v165
    %273 = vmatpush1.msra.mxu0 %v164
    %274 = vmatprep.subr.mxu0 %v160
    %275 = vmatpush1.msra.mxu0 %v159
    %276 = vmatprep.subr.mxu0 %v155
    %277 = vmatpush1.msra.mxu0 %v154
    %278 = vmatprep.subr.mxu0 %v150
    %279 = vmatpush1.msra.mxu0 %v149
    %280 = vmatprep.subr.mxu0 %v145
    %281 = vmatpush1.msra.mxu0 %v144
    %282 = vmatprep.subr.mxu0 %v140
    %283 = vmatpush1.msra.mxu0 %v139
    %284 = vmatprep.subr.mxu0 %v135
    %285 = vmatpush1.msra.mxu0 %v134
    %286 = vmatprep.subr.mxu0 %v130
    %287 = vmatpush1.msra.mxu0 %v129
    %288 = vmatprep.subr.mxu0 %v125
    %289 = vmatpush1.msra.mxu0 %v124
    %290 = vmatprep.subr.mxu0 %v120
    %291 = vmatpush1.msra.mxu0 %v119
    %292 = vmatprep.subr.mxu0 %v115
    %293 = vmatpush1.msra.mxu0 %v114
    %294 = vmatprep.subr.mxu0 %v110
    %295 = vmatpush1.msra.mxu0 %v109
    %296 = vmatprep.subr.mxu0 %v105
    %297 = vmatpush1.msra.mxu0 %v104
    %298 = vmatprep.subr.mxu0 %v100
    %299 = vmatpush1.msra.mxu0 %v99
    %300 = vmatprep.subr.mxu0 %v95
    %301 = vmatpush1.msra.mxu0 %v94
    %302 = vmatprep.subr.mxu0 0.0
    %303 = vmatpush2.msra.mxu0 0.0
    %304 = vmatprep.subr.mxu0 0.0
    %305 = vmatpush2.msra.mxu0 0.0
    %306 = vmatprep.subr.mxu0 0.0
    %307 = vmatpush2.msra.mxu0 0.0
    %308 = vmatprep.subr.mxu0 0.0
    %309 = vmatpush2.msra.mxu0 0.0
    %310 = vmatprep.subr.mxu0 0.0
    %311 = vmatpush2.msra.mxu0 0.0
    %312 = vmatprep.subr.mxu0 0.0
    %313 = vmatpush2.msra.mxu0 0.0
    %314 = vmatprep.subr.mxu0 0.0
    %315 = vmatpush2.msra.mxu0 0.0
    %316 = vmatprep.subr.mxu0 0.0
    %317 = vmatpush2.msra.mxu0 0.0
    %318 = vmatprep.subr.mxu0 0.0
    %319 = vmatpush2.msra.mxu0 0.0
    %320 = vmatprep.subr.mxu0 0.0
    %321 = vmatpush2.msra.mxu0 0.0
    %322 = vmatprep.subr.mxu0 0.0
    %323 = vmatpush2.msra.mxu0 0.0
    %324 = vmatprep.subr.mxu0 0.0
    %325 = vmatpush2.msra.mxu0 0.0
    %326 = vmatprep.subr.mxu0 0.0
    %327 = vmatpush2.msra.mxu0 0.0
    %328 = vmatprep.subr.mxu0 0.0
    %329 = vmatpush2.msra.mxu0 0.0
    %330 = vmatprep.subr.mxu0 0.0
    %331 = vmatpush2.msra.mxu0 0.0
    %332 = vmatprep.subr.mxu0 0.0
    %333 = vmatpush2.msra.mxu0 0.0
    %334 = vmatprep.mubr.f32.mxu0 0.0
    %335 = vmatmul.mubr.f32.gmra.mxu0 %v91
    %v336 = vpop.f32.mrf.mxu0
    %v337 = vadd.f32 %v185, %v336
    %v338 = vpop.f32.mrf.mxu0
    %v339 = vadd.f32 %v189, %v338
    %340 = vdwg.mxu0
    %341 = vmatprep.subr.mxu0 0.0
    %342 = vmatpush1.msra.mxu0 %v171
    %343 = vmatprep.subr.mxu0 0.0
    %344 = vmatpush1.msra.mxu0 %v166
    %345 = vmatprep.subr.mxu0 0.0
    %346 = vmatpush1.msra.mxu0 %v161
    %347 = vmatprep.subr.mxu0 0.0
    %348 = vmatpush1.msra.mxu0 %v156
    %349 = vmatprep.subr.mxu0 0.0
    %350 = vmatpush1.msra.mxu0 %v151
    %351 = vmatprep.subr.mxu0 0.0
    %352 = vmatpush1.msra.mxu0 %v146
    %353 = vmatprep.subr.mxu0 0.0
    %354 = vmatpush1.msra.mxu0 %v141
    %355 = vmatprep.subr.mxu0 0.0
    %356 = vmatpush1.msra.mxu0 %v136
    %357 = vmatprep.subr.mxu0 0.0
    %358 = vmatpush1.msra.mxu0 %v131
    %359 = vmatprep.subr.mxu0 0.0
    %360 = vmatpush1.msra.mxu0 %v126
    %361 = vmatprep.subr.mxu0 0.0
    %362 = vmatpush1.msra.mxu0 %v121
    %363 = vmatprep.subr.mxu0 0.0
    %364 = vmatpush1.msra.mxu0 %v116
    %365 = vmatprep.subr.mxu0 0.0
    %366 = vmatpush1.msra.mxu0 %v111
    %367 = vmatprep.subr.mxu0 0.0
    %368 = vmatpush1.msra.mxu0 %v106
    %369 = vmatprep.subr.mxu0 0.0
    %370 = vmatpush1.msra.mxu0 %v101
    %371 = vmatprep.subr.mxu0 0.0
    %372 = vmatpush1.msra.mxu0 %v96
    %373 = vmatprep.subr.mxu0 0.0
    %374 = vmatpush2.msra.mxu0 0.0
    %375 = vmatprep.subr.mxu0 0.0
    %376 = vmatpush2.msra.mxu0 0.0
    %377 = vmatprep.subr.mxu0 0.0
    %378 = vmatpush2.msra.mxu0 0.0
    %379 = vmatprep.subr.mxu0 0.0
    %380 = vmatpush2.msra.mxu0 0.0
    %381 = vmatprep.subr.mxu0 0.0
    %382 = vmatpush2.msra.mxu0 0.0
    %383 = vmatprep.subr.mxu0 0.0
    %384 = vmatpush2.msra.mxu0 0.0
    %385 = vmatprep.subr.mxu0 0.0
    %386 = vmatpush2.msra.mxu0 0.0
    %387 = vmatprep.subr.mxu0 0.0
    %388 = vmatpush2.msra.mxu0 0.0
    %389 = vmatprep.subr.mxu0 0.0
    %390 = vmatpush2.msra.mxu0 0.0
    %391 = vmatprep.subr.mxu0 0.0
    %392 = vmatpush2.msra.mxu0 0.0
    %393 = vmatprep.subr.mxu0 0.0
    %394 = vmatpush2.msra.mxu0 0.0
    %395 = vmatprep.subr.mxu0 0.0
    %396 = vmatpush2.msra.mxu0 0.0
    %397 = vmatprep.subr.mxu0 0.0
    %398 = vmatpush2.msra.mxu0 0.0
    %399 = vmatprep.subr.mxu0 0.0
    %400 = vmatpush2.msra.mxu0 0.0
    %401 = vmatprep.subr.mxu0 0.0
    %402 = vmatpush2.msra.mxu0 0.0
    %403 = vmatprep.subr.mxu0 0.0
    %404 = vmatpush2.msra.mxu0 0.0
    %405 = vmatprep.mubr.f32.mxu0 0.0
    %406 = vmatmul.mubr.f32.gmra.mxu0 %v91
    %v407 = vpop.f32.mrf.mxu0
    %v408 = vadd.f32 %v193, %v407
    %v409 = vpop.f32.mrf.mxu0
    %410 = vdwg.mxu0
    %v411 = vmax.f32 %v266, 0.0
    %v412 = vmax.f32 %v268, 0.0
    %v413 = vmax.f32 %v337, 0.0
    %v414 = vmax.f32 %v339, 0.0
    %v415 = vmax.f32 %v408, 0.0
    %v416 = vld [vmem:[#allocation8] sm:$0xff]
    %v417 = vld [vmem:[#allocation8 + $0x8] sm:$0xff]
    %v418 = vld [vmem:[#allocation8 + $0x10] sm:$0xff]
    %v419 = vld [vmem:[#allocation8 + $0x18] sm:$0xff]
    %v420 = vld [vmem:[#allocation8 + $0x20] sm:$0xff]
    %v421 = vld [vmem:[#allocation8 + $0x28] sm:$0xff]
    %v422 = vld [vmem:[#allocation8 + $0x30] sm:$0xff]
    %v423 = vld [vmem:[#allocation8 + $0x38] sm:$0xff]
    %v424 = vld [vmem:[#allocation8 + $0x40] sm:$0xff]
    %v425 = vld [vmem:[#allocation8 + $0x48] sm:$0xff]
    %v426 = vld [vmem:[#allocation8 + $0x50] sm:$0xff]
    %v427 = vld [vmem:[#allocation8 + $0x58] sm:$0xff]
    %v428 = vld [vmem:[#allocation8 + $0x60] sm:$0xff]
    %v429 = vld [vmem:[#allocation8 + $0x68] sm:$0xff]
    %v430 = vld [vmem:[#allocation8 + $0x70] sm:$0xff]
    %v431 = vld [vmem:[#allocation8 + $0x78] sm:$0xff]
    %v432 = vld [vmem:[#allocation8 + $0x80] sm:$0xff]
    %v433 = vld [vmem:[#allocation8 + $0x88] sm:$0xff]
    %v434 = vld [vmem:[#allocation8 + $0x90] sm:$0xff]
    %v435 = vld [vmem:[#allocation8 + $0x98] sm:$0xff]
    %v436 = vld [vmem:[#allocation8 + $0xa0] sm:$0xff]
    %v437 = vld [vmem:[#allocation8 + $0xa8] sm:$0xff]
    %v438 = vld [vmem:[#allocation8 + $0xb0] sm:$0xff]
    %v439 = vld [vmem:[#allocation8 + $0xb8] sm:$0xff]
    %v440 = vld [vmem:[#allocation8 + $0xc0] sm:$0xff]
    %v441 = vld [vmem:[#allocation8 + $0xc8] sm:$0xff]
    %v442 = vld [vmem:[#allocation8 + $0xd0] sm:$0xff]
    %v443 = vld [vmem:[#allocation8 + $0xd8] sm:$0xff]
    %v444 = vld [vmem:[#allocation8 + $0xe0] sm:$0xff]
    %v445 = vld [vmem:[#allocation8 + $0xe8] sm:$0xff]
    %v446 = vld [vmem:[#allocation8 + $0xf0] sm:$0xff]
    %v447 = vld [vmem:[#allocation8 + $0xf8] sm:$0xff]
    %v448 = vld [vmem:[#allocation8 + $0x100] sm:$0xff]
    %v449 = vld [vmem:[#allocation8 + $0x108] sm:$0xff]
    %v450 = vld [vmem:[#allocation8 + $0x110] sm:$0xff]
    %v451 = vld [vmem:[#allocation8 + $0x118] sm:$0xff]
    %v452 = vld [vmem:[#allocation8 + $0x120] sm:$0xff]
    %v453 = vld [vmem:[#allocation8 + $0x128] sm:$0xff]
    %v454 = vld [vmem:[#allocation8 + $0x130] sm:$0xff]
    %v455 = vld [vmem:[#allocation8 + $0x138] sm:$0xff]
    %v456 = vld [vmem:[#allocation8 + $0x140] sm:$0xff]
    %v457 = vld [vmem:[#allocation8 + $0x148] sm:$0xff]
    %v458 = vld [vmem:[#allocation8 + $0x150] sm:$0xff]
    %v459 = vld [vmem:[#allocation8 + $0x158] sm:$0xff]
    %v460 = vld [vmem:[#allocation8 + $0x160] sm:$0xff]
    %v461 = vld [vmem:[#allocation8 + $0x168] sm:$0xff]
    %v462 = vld [vmem:[#allocation8 + $0x170] sm:$0xff]
    %v463 = vld [vmem:[#allocation8 + $0x178] sm:$0xff]
    %v464 = vld [vmem:[#allocation8 + $0x180] sm:$0xff]
    %v465 = vld [vmem:[#allocation8 + $0x188] sm:$0xff]
    %v466 = vld [vmem:[#allocation8 + $0x190] sm:$0xff]
    %v467 = vld [vmem:[#allocation8 + $0x198] sm:$0xff]
    %v468 = vld [vmem:[#allocation8 + $0x1a0] sm:$0xff]
    %v469 = vld [vmem:[#allocation8 + $0x1a8] sm:$0xff]
    %v470 = vld [vmem:[#allocation8 + $0x1b0] sm:$0xff]
    %v471 = vld [vmem:[#allocation8 + $0x1b8] sm:$0xff]
    %v472 = vld [vmem:[#allocation8 + $0x1c0] sm:$0xff]
    %v473 = vld [vmem:[#allocation8 + $0x1c8] sm:$0xff]
    %v474 = vld [vmem:[#allocation8 + $0x1d0] sm:$0xff]
    %v475 = vld [vmem:[#allocation8 + $0x1d8] sm:$0xff]
    %v476 = vld [vmem:[#allocation8 + $0x1e0] sm:$0xff]
    %v477 = vld [vmem:[#allocation8 + $0x1e8] sm:$0xff]
    %v478 = vld [vmem:[#allocation8 + $0x1f0] sm:$0xff]
    %v479 = vld [vmem:[#allocation8 + $0x1f8] sm:$0xff]
    %v480 = vld [vmem:[#allocation8 + $0x200] sm:$0xff]
    %v481 = vld [vmem:[#allocation8 + $0x208] sm:$0xff]
    %v482 = vld [vmem:[#allocation8 + $0x210] sm:$0xff]
    %v483 = vld [vmem:[#allocation8 + $0x218] sm:$0xff]
    %v484 = vld [vmem:[#allocation8 + $0x220] sm:$0xff]
    %v485 = vld [vmem:[#allocation8 + $0x228] sm:$0xff]
    %v486 = vld [vmem:[#allocation8 + $0x230] sm:$0xff]
    %v487 = vld [vmem:[#allocation8 + $0x238] sm:$0xff]
    %v488 = vld [vmem:[#allocation8 + $0x240] sm:$0xff]
    %v489 = vld [vmem:[#allocation8 + $0x248] sm:$0xff]
    %v490 = vld [vmem:[#allocation8 + $0x250] sm:$0xff]
    %v491 = vld [vmem:[#allocation8 + $0x258] sm:$0xff]
    %v492 = vld [vmem:[#allocation8 + $0x260] sm:$0xff]
    %v493 = vld [vmem:[#allocation8 + $0x268] sm:$0xff]
    %v494 = vld [vmem:[#allocation8 + $0x270] sm:$0xff]
    %v495 = vld [vmem:[#allocation8 + $0x278] sm:$0xff]
    %v496 = vld [vmem:[%s4] sm:$0x1]
    %v498 = vlaneseq
    %v499 = vshrl.u32 %v498, 7
    %v500 = vsub.s32 0, %v499
    %v501 = vrot.slane %v496, %v500
    %503 = vmatprep.subr.mxu0 0.0
    %504 = vmatpush1.msra.mxu0 %v431
    %505 = vmatprep.subr.mxu0 0.0
    %506 = vmatpush1.msra.mxu0 %v430
    %507 = vmatprep.subr.mxu0 0.0
    %508 = vmatpush1.msra.mxu0 %v429
    %509 = vmatprep.subr.mxu0 0.0
    %510 = vmatpush1.msra.mxu0 %v428
    %511 = vmatprep.subr.mxu0 0.0
    %512 = vmatpush1.msra.mxu0 %v427
    %513 = vmatprep.subr.mxu0 0.0
    %514 = vmatpush1.msra.mxu0 %v426
    %515 = vmatprep.subr.mxu0 0.0
    %516 = vmatpush1.msra.mxu0 %v425
    %517 = vmatprep.subr.mxu0 0.0
    %518 = vmatpush1.msra.mxu0 %v424
    %519 = vmatprep.subr.mxu0 0.0
    %520 = vmatpush1.msra.mxu0 %v423
    %521 = vmatprep.subr.mxu0 0.0
    %522 = vmatpush1.msra.mxu0 %v422
    %523 = vmatprep.subr.mxu0 0.0
    %524 = vmatpush1.msra.mxu0 %v421
    %525 = vmatprep.subr.mxu0 0.0
    %526 = vmatpush1.msra.mxu0 %v420
    %527 = vmatprep.subr.mxu0 0.0
    %528 = vmatpush1.msra.mxu0 %v419
    %529 = vmatprep.subr.mxu0 0.0
    %530 = vmatpush1.msra.mxu0 %v418
    %531 = vmatprep.subr.mxu0 0.0
    %532 = vmatpush1.msra.mxu0 %v417
    %533 = vmatprep.subr.mxu0 0.0
    %534 = vmatpush1.msra.mxu0 %v416
    %535 = vmatprep.subr.mxu0 0.0
    %536 = vmatpush2.msra.mxu0 %v447
    %537 = vmatprep.subr.mxu0 0.0
    %538 = vmatpush2.msra.mxu0 %v446
    %539 = vmatprep.subr.mxu0 0.0
    %540 = vmatpush2.msra.mxu0 %v445
    %541 = vmatprep.subr.mxu0 0.0
    %542 = vmatpush2.msra.mxu0 %v444
    %543 = vmatprep.subr.mxu0 0.0
    %544 = vmatpush2.msra.mxu0 %v443
    %545 = vmatprep.subr.mxu0 0.0
    %546 = vmatpush2.msra.mxu0 %v442
    %547 = vmatprep.subr.mxu0 0.0
    %548 = vmatpush2.msra.mxu0 %v441
    %549 = vmatprep.subr.mxu0 0.0
    %550 = vmatpush2.msra.mxu0 %v440
    %551 = vmatprep.subr.mxu0 0.0
    %552 = vmatpush2.msra.mxu0 %v439
    %553 = vmatprep.subr.mxu0 0.0
    %554 = vmatpush2.msra.mxu0 %v438
    %555 = vmatprep.subr.mxu0 0.0
    %556 = vmatpush2.msra.mxu0 %v437
    %557 = vmatprep.subr.mxu0 0.0
    %558 = vmatpush2.msra.mxu0 %v436
    %559 = vmatprep.subr.mxu0 0.0
    %560 = vmatpush2.msra.mxu0 %v435
    %561 = vmatprep.subr.mxu0 0.0
    %562 = vmatpush2.msra.mxu0 %v434
    %563 = vmatprep.subr.mxu0 0.0
    %564 = vmatpush2.msra.mxu0 %v433
    %565 = vmatprep.subr.mxu0 0.0
    %566 = vmatpush2.msra.mxu0 %v432
    %567 = vmatprep.mubr.f32.mxu0 %v412
    %568 = vmatmul.mubr.f32.gmra.mxu0 %v411
    %v569 = vpop.f32.mrf.mxu0
    %v570 = vadd.f32 %v501, %v569
    %v571 = vpop.f32.mrf.mxu0
    %572 = vdwg.mxu0
    %573 = vmatprep.subr.mxu0 0.0
    %574 = vmatpush1.msra.mxu0 %v463
    %575 = vmatprep.subr.mxu0 0.0
    %576 = vmatpush1.msra.mxu0 %v462
    %577 = vmatprep.subr.mxu0 0.0
    %578 = vmatpush1.msra.mxu0 %v461
    %579 = vmatprep.subr.mxu0 0.0
    %580 = vmatpush1.msra.mxu0 %v460
    %581 = vmatprep.subr.mxu0 0.0
    %582 = vmatpush1.msra.mxu0 %v459
    %583 = vmatprep.subr.mxu0 0.0
    %584 = vmatpush1.msra.mxu0 %v458
    %585 = vmatprep.subr.mxu0 0.0
    %586 = vmatpush1.msra.mxu0 %v457
    %587 = vmatprep.subr.mxu0 0.0
    %588 = vmatpush1.msra.mxu0 %v456
    %589 = vmatprep.subr.mxu0 0.0
    %590 = vmatpush1.msra.mxu0 %v455
    %591 = vmatprep.subr.mxu0 0.0
    %592 = vmatpush1.msra.mxu0 %v454
    %593 = vmatprep.subr.mxu0 0.0
    %594 = vmatpush1.msra.mxu0 %v453
    %595 = vmatprep.subr.mxu0 0.0
    %596 = vmatpush1.msra.mxu0 %v452
    %597 = vmatprep.subr.mxu0 0.0
    %598 = vmatpush1.msra.mxu0 %v451
    %599 = vmatprep.subr.mxu0 0.0
    %600 = vmatpush1.msra.mxu0 %v450
    %601 = vmatprep.subr.mxu0 0.0
    %602 = vmatpush1.msra.mxu0 %v449
    %603 = vmatprep.subr.mxu0 0.0
    %604 = vmatpush1.msra.mxu0 %v448
    %605 = vmatprep.subr.mxu0 0.0
    %606 = vmatpush2.msra.mxu0 %v479
    %607 = vmatprep.subr.mxu0 0.0
    %608 = vmatpush2.msra.mxu0 %v478
    %609 = vmatprep.subr.mxu0 0.0
    %610 = vmatpush2.msra.mxu0 %v477
    %611 = vmatprep.subr.mxu0 0.0
    %612 = vmatpush2.msra.mxu0 %v476
    %613 = vmatprep.subr.mxu0 0.0
    %614 = vmatpush2.msra.mxu0 %v475
    %615 = vmatprep.subr.mxu0 0.0
    %616 = vmatpush2.msra.mxu0 %v474
    %617 = vmatprep.subr.mxu0 0.0
    %618 = vmatpush2.msra.mxu0 %v473
    %619 = vmatprep.subr.mxu0 0.0
    %620 = vmatpush2.msra.mxu0 %v472
    %621 = vmatprep.subr.mxu0 0.0
    %622 = vmatpush2.msra.mxu0 %v471
    %623 = vmatprep.subr.mxu0 0.0
    %624 = vmatpush2.msra.mxu0 %v470
    %625 = vmatprep.subr.mxu0 0.0
    %626 = vmatpush2.msra.mxu0 %v469
    %627 = vmatprep.subr.mxu0 0.0
    %628 = vmatpush2.msra.mxu0 %v468
    %629 = vmatprep.subr.mxu0 0.0
    %630 = vmatpush2.msra.mxu0 %v467
    %631 = vmatprep.subr.mxu0 0.0
    %632 = vmatpush2.msra.mxu0 %v466
    %633 = vmatprep.subr.mxu0 0.0
    %634 = vmatpush2.msra.mxu0 %v465
    %635 = vmatprep.subr.mxu0 0.0
    %636 = vmatpush2.msra.mxu0 %v464
    %637 = vmatprep.mubr.f32.mxu0 %v414
    %638 = vmatmul.mubr.f32.gmra.mxu0 %v413
    %v639 = vpop.f32.mrf.mxu0
    %v640 = vadd.f32 %v570, %v639
    %v641 = vpop.f32.mrf.mxu0
    %642 = vdwg.mxu0
    %643 = vmatprep.subr.mxu0 0.0
    %644 = vmatpush1.msra.mxu0 %v495
    %645 = vmatprep.subr.mxu0 0.0
    %646 = vmatpush1.msra.mxu0 %v494
    %647 = vmatprep.subr.mxu0 0.0
    %648 = vmatpush1.msra.mxu0 %v493
    %649 = vmatprep.subr.mxu0 0.0
    %650 = vmatpush1.msra.mxu0 %v492
    %651 = vmatprep.subr.mxu0 0.0
    %652 = vmatpush1.msra.mxu0 %v491
    %653 = vmatprep.subr.mxu0 0.0
    %654 = vmatpush1.msra.mxu0 %v490
    %655 = vmatprep.subr.mxu0 0.0
    %656 = vmatpush1.msra.mxu0 %v489
    %657 = vmatprep.subr.mxu0 0.0
    %658 = vmatpush1.msra.mxu0 %v488
    %659 = vmatprep.subr.mxu0 0.0
    %660 = vmatpush1.msra.mxu0 %v487
    %661 = vmatprep.subr.mxu0 0.0
    %662 = vmatpush1.msra.mxu0 %v486
    %663 = vmatprep.subr.mxu0 0.0
    %664 = vmatpush1.msra.mxu0 %v485
    %665 = vmatprep.subr.mxu0 0.0
    %666 = vmatpush1.msra.mxu0 %v484
    %667 = vmatprep.subr.mxu0 0.0
    %668 = vmatpush1.msra.mxu0 %v483
    %669 = vmatprep.subr.mxu0 0.0
    %670 = vmatpush1.msra.mxu0 %v482
    %671 = vmatprep.subr.mxu0 0.0
    %672 = vmatpush1.msra.mxu0 %v481
    %673 = vmatprep.subr.mxu0 0.0
    %674 = vmatpush1.msra.mxu0 %v480
    %675 = vmatprep.subr.mxu0 0.0
    %676 = vmatpush2.msra.mxu0 0.0
    %677 = vmatprep.subr.mxu0 0.0
    %678 = vmatpush2.msra.mxu0 0.0
    %679 = vmatprep.subr.mxu0 0.0
    %680 = vmatpush2.msra.mxu0 0.0
    %681 = vmatprep.subr.mxu0 0.0
    %682 = vmatpush2.msra.mxu0 0.0
    %683 = vmatprep.subr.mxu0 0.0
    %684 = vmatpush2.msra.mxu0 0.0
    %685 = vmatprep.subr.mxu0 0.0
    %686 = vmatpush2.msra.mxu0 0.0
    %687 = vmatprep.subr.mxu0 0.0
    %688 = vmatpush2.msra.mxu0 0.0
    %689 = vmatprep.subr.mxu0 0.0
    %690 = vmatpush2.msra.mxu0 0.0
    %691 = vmatprep.subr.mxu0 0.0
    %692 = vmatpush2.msra.mxu0 0.0
    %693 = vmatprep.subr.mxu0 0.0
    %694 = vmatpush2.msra.mxu0 0.0
    %695 = vmatprep.subr.mxu0 0.0
    %696 = vmatpush2.msra.mxu0 0.0
    %697 = vmatprep.subr.mxu0 0.0
    %698 = vmatpush2.msra.mxu0 0.0
    %699 = vmatprep.subr.mxu0 0.0
    %700 = vmatpush2.msra.mxu0 0.0
    %701 = vmatprep.subr.mxu0 0.0
    %702 = vmatpush2.msra.mxu0 0.0
    %703 = vmatprep.subr.mxu0 0.0
    %704 = vmatpush2.msra.mxu0 0.0
    %705 = vmatprep.subr.mxu0 0.0
    %706 = vmatpush2.msra.mxu0 0.0
    %707 = vmatprep.mubr.f32.mxu0 0.0
    %708 = vmatmul.mubr.f32.gmra.mxu0 %v415
    %v709 = vpop.f32.mrf.mxu0
    %v710 = vadd.f32 %v640, %v709
    %v711 = vpop.f32.mrf.mxu0
    %712 = vdwg.mxu0
    %v713 = vmax.f32 %v710, 0.0
    %v714 = vld [vmem:[#allocation10] sm:$0xff]
    %v715 = vld [vmem:[#allocation10 + $0x8] sm:$0xff]
    %v716 = vld [vmem:[#allocation10 + $0x10] sm:$0xff]
    %v717 = vld [vmem:[#allocation10 + $0x18] sm:$0xff]
    %v718 = vld [vmem:[#allocation10 + $0x20] sm:$0xff]
    %v719 = vld [vmem:[#allocation10 + $0x28] sm:$0xff]
    %v720 = vld [vmem:[#allocation10 + $0x30] sm:$0xff]
    %v721 = vld [vmem:[#allocation10 + $0x38] sm:$0xff]
    %v722 = vld [vmem:[#allocation10 + $0x40] sm:$0xff]
    %v723 = vld [vmem:[#allocation10 + $0x48] sm:$0xff]
    %v724 = vld [vmem:[#allocation10 + $0x50] sm:$0xff]
    %v725 = vld [vmem:[#allocation10 + $0x58] sm:$0xff]
    %v726 = vld [vmem:[#allocation10 + $0x60] sm:$0xff]
    %v727 = vld [vmem:[#allocation10 + $0x68] sm:$0xff]
    %v728 = vld [vmem:[#allocation10 + $0x70] sm:$0xff]
    %v729 = vld [vmem:[#allocation10 + $0x78] sm:$0xff]
    %v730 = vld [vmem:[%s6] sm:$0x1]
    %v732 = vlaneseq
    %v733 = vshrl.u32 %v732, 7
    %v734 = vsub.s32 0, %v733
    %v735 = vrot.slane %v730, %v734
    %737 = vmatprep.subr.mxu0 0.0
    %738 = vmatpush1.msra.mxu0 %v729
    %739 = vmatprep.subr.mxu0 0.0
    %740 = vmatpush1.msra.mxu0 %v728
    %741 = vmatprep.subr.mxu0 0.0
    %742 = vmatpush1.msra.mxu0 %v727
    %743 = vmatprep.subr.mxu0 0.0
    %744 = vmatpush1.msra.mxu0 %v726
    %745 = vmatprep.subr.mxu0 0.0
    %746 = vmatpush1.msra.mxu0 %v725
    %747 = vmatprep.subr.mxu0 0.0
    %748 = vmatpush1.msra.mxu0 %v724
    %749 = vmatprep.subr.mxu0 0.0
    %750 = vmatpush1.msra.mxu0 %v723
    %751 = vmatprep.subr.mxu0 0.0
    %752 = vmatpush1.msra.mxu0 %v722
    %753 = vmatprep.subr.mxu0 0.0
    %754 = vmatpush1.msra.mxu0 %v721
    %755 = vmatprep.subr.mxu0 0.0
    %756 = vmatpush1.msra.mxu0 %v720
    %757 = vmatprep.subr.mxu0 0.0
    %758 = vmatpush1.msra.mxu0 %v719
    %759 = vmatprep.subr.mxu0 0.0
    %760 = vmatpush1.msra.mxu0 %v718
    %761 = vmatprep.subr.mxu0 0.0
    %762 = vmatpush1.msra.mxu0 %v717
    %763 = vmatprep.subr.mxu0 0.0
    %764 = vmatpush1.msra.mxu0 %v716
    %765 = vmatprep.subr.mxu0 0.0
    %766 = vmatpush1.msra.mxu0 %v715
    %767 = vmatprep.subr.mxu0 0.0
    %768 = vmatpush1.msra.mxu0 %v714
    %769 = vmatprep.subr.mxu0 0.0
    %770 = vmatpush2.msra.mxu0 0.0
    %771 = vmatprep.subr.mxu0 0.0
    %772 = vmatpush2.msra.mxu0 0.0
    %773 = vmatprep.subr.mxu0 0.0
    %774 = vmatpush2.msra.mxu0 0.0
    %775 = vmatprep.subr.mxu0 0.0
    %776 = vmatpush2.msra.mxu0 0.0
    %777 = vmatprep.subr.mxu0 0.0
    %778 = vmatpush2.msra.mxu0 0.0
    %779 = vmatprep.subr.mxu0 0.0
    %780 = vmatpush2.msra.mxu0 0.0
    %781 = vmatprep.subr.mxu0 0.0
    %782 = vmatpush2.msra.mxu0 0.0
    %783 = vmatprep.subr.mxu0 0.0
    %784 = vmatpush2.msra.mxu0 0.0
    %785 = vmatprep.subr.mxu0 0.0
    %786 = vmatpush2.msra.mxu0 0.0
    %787 = vmatprep.subr.mxu0 0.0
    %788 = vmatpush2.msra.mxu0 0.0
    %789 = vmatprep.subr.mxu0 0.0
    %790 = vmatpush2.msra.mxu0 0.0
    %791 = vmatprep.subr.mxu0 0.0
    %792 = vmatpush2.msra.mxu0 0.0
    %793 = vmatprep.subr.mxu0 0.0
    %794 = vmatpush2.msra.mxu0 0.0
    %795 = vmatprep.subr.mxu0 0.0
    %796 = vmatpush2.msra.mxu0 0.0
    %797 = vmatprep.subr.mxu0 0.0
    %798 = vmatpush2.msra.mxu0 0.0
    %799 = vmatprep.subr.mxu0 0.0
    %800 = vmatpush2.msra.mxu0 0.0
    %801 = vmatprep.mubr.f32.mxu0 0.0
    %802 = vmatmul.mubr.f32.gmra.mxu0 %v713
    %v803 = vpop.f32.mrf.mxu0
    %v804 = vadd.f32 %v735, %v803
    %v805 = vpop.f32.mrf.mxu0
    %806 = vdwg.mxu0
    %807 = vst [vmem:[#allocation11] sm:$0xff] %v804
    // Predicated region
    $region50: #{tpu_custom_call.1} parent=1 // pred_check
      _
    $region51: #{tpu_custom_call.1} parent=1 // pred_check_branch
      %809 = sbr.rel (0) target = $region53
    $region52: #{tpu_custom_call.1} parent=1 // pred_region
      %s811 = ssub.s32 128, 128
      %812 = vsyncadd [#allocation4], %s811
      %s814 = sshll.u32 [#allocation11], 4
      %s815 = int_to_ptr.vmem [resolvable:$true] %s814
      %817 = dma.vmem_to_hbm [thread:$0]  %s815, 128, %s7, [#allocation4]
    $region53: #{tpu_custom_call.1} parent=1 // pred_fallthru
      _
    // Predicated region
    $region54: #{tpu_custom_call.1} parent=1 // pred_check
      _
    $region55: #{tpu_custom_call.1} parent=1 // pred_check_branch
      %819 = sbr.rel (0) target = $region57
    $region56: #{tpu_custom_call.1} parent=1 // pred_region
      %820 = dma.done [#allocation4], 128
    $region57: #{tpu_custom_call.1} parent=1 // pred_fallthru
      _
    %821 = vsyncpa [#allocation3], 1
    %822 = vsyncpa [#allocation6], 1
    %823 = vsyncpa [#allocation9], 1
    %824 = vsyncpa [#allocation4], 1

</llo_original>
